<compile_context>
chip_gen: v5e
topology: v5e:2x2
jax: 0.10.0
libtpu: 0.0.40
codegen_flags: <defaults>
</compile_context>

<pallas_src>
import functools

import jax
import jax.numpy as jnp
from jax.experimental import pallas as pl
from jax.experimental.pallas import tpu as pltpu


def _round_up(x, m):
    return (x + m - 1) // m * m


def _pick_time_block(T, cap=16):
    """Largest divisor of T that is <= cap (so no padded timesteps corrupt the state)."""
    for d in range(min(T, cap), 0, -1):
        if T % d == 0:
            return d
    return 1


def _pick_batch_tile(Bp8):
    """Generation-aware batch tile: 256 on v6e (256-wide MXU), 128 otherwise."""
    try:
        kind = jax.devices()[0].device_kind.lower()
    except Exception:  # pragma: no cover - defensive
        kind = ""
    cap = 256 if "v6" in kind else 128
    return min(Bp8, cap)


def _vmem_limit_bytes(Tc, Bt, Ip, Hp):
    G = 4 * Hp
    weights = 2 * ((Ip * G + Hp * G) * 2 + G * 4)   # Wx + Wh (bf16) + bias (f32), 2x budget
    x_blk = 2 * Tc * Bt * Ip * 2                    # double-buffered bf16 x block
    y_blk = 2 * Tc * Bt * Hp * 2                    # double-buffered bf16 y block
    state = 2 * 2 * (Bt * 2 * Hp * 4)               # packed (h, c) in + out blocks
    scratch = Bt * Hp * (2 + 4)                     # h carry (bf16) + c carry (f32)
    work = 4 * Bt * G * 4                           # gates + activation temporaries
    total = weights + x_blk + y_blk + state + scratch + work
    return int(min(100 * 2**20, max(32 * 2**20, (total * 3) // 2 + (2 << 20))))


def _sigmoid_via_tanh(x):
    # sigmoid(x) = 0.5 * (1 + tanh(x/2)) : one EUP push instead of exp + reciprocal.
    return 0.5 * jnp.tanh(0.5 * x) + 0.5


# ---------------------------------------------------------------------------
# Fused recurrence kernel over the whole sequence.
#   grid = (batch_tiles, T // Tc); Wx, Wh, bias resident in VMEM;
#   (h, c) carried in VMEM scratch; Tc timesteps unrolled per grid step.
# ---------------------------------------------------------------------------
def _lstm_seq_kernel(x_ref, wx_ref, wh_ref, b_ref, state_in_ref,
                     y_ref, state_out_ref, h_scr, c_scr):
    tb = pl.program_id(1)
    Hp = h_scr.shape[-1]
    Tc = x_ref.shape[0]

    @pl.when(tb == 0)
    def _():
        # Load the initial (h, c) for this batch tile from the packed state slab.
        h_scr[...] = state_in_ref[:, 0:Hp].astype(jnp.bfloat16)
        c_scr[...] = state_in_ref[:, Hp:2 * Hp]

    def step(t, carry):
        h_prev = h_scr[...]                       # bf16
        c_prev = c_scr[...]                       # f32
        # gates = x_t @ Wx + h_{t-1} @ Wh + b   (bf16 x bf16 -> f32 accumulation)
        gates = (
            jnp.dot(x_ref[t], wx_ref[...], preferred_element_type=jnp.float32)
            + jnp.dot(h_prev, wh_ref[...], preferred_element_type=jnp.float32)
            + b_ref[...]
        )
        # Gate order [forget, update, cand, output]; every slice is 128-lane aligned.
        forget_state = _sigmoid_via_tanh(gates[:, 0 * Hp:1 * Hp])
        update_state = _sigmoid_via_tanh(gates[:, 1 * Hp:2 * Hp])
        cell_cand = jnp.tanh(gates[:, 2 * Hp:3 * Hp])
        output_state = _sigmoid_via_tanh(gates[:, 3 * Hp:4 * Hp])

        c_new = forget_state * c_prev + update_state * cell_cand
        h_new = output_state * jnp.tanh(c_new)

        h_scr[...] = h_new.astype(jnp.bfloat16)
        c_scr[...] = c_new
        y_ref[t] = h_new.astype(jnp.bfloat16)     # per-step hidden output (bf16)
        return carry

    jax.lax.fori_loop(0, Tc, step, 0, unroll=True)

    # Write the packed final state exactly once, on the last time block.
    @pl.when(tb == pl.num_programs(1) - 1)
    def _():
        state_out_ref[:, 0:Hp] = h_scr[...].astype(jnp.float32)
        state_out_ref[:, Hp:2 * Hp] = c_scr[...]


@functools.partial(jax.jit, static_argnames=("batch_tile", "time_block"))
def _lstm_seq_pallas(x_pad, wx, wh, bias, state_in, *, batch_tile, time_block):
    T, Bp, Ip = x_pad.shape
    G = wx.shape[1]
    Hp = G // 4
    nb = Bp // batch_tile
    nt = T // time_block

    y, state_out = pl.pallas_call(
        _lstm_seq_kernel,
        out_shape=(
            jax.ShapeDtypeStruct((T, Bp, Hp), jnp.bfloat16),
            jax.ShapeDtypeStruct((Bp, 2 * Hp), jnp.float32),
        ),
        grid_spec=pltpu.PrefetchScalarGridSpec(
            num_scalar_prefetch=0,
            grid=(nb, nt),
            in_specs=[
                pl.BlockSpec((time_block, batch_tile, Ip), lambda b, t: (t, b, 0)),  # raw x, streamed
                pl.BlockSpec((Ip, G), lambda b, t: (0, 0)),                          # Wx, VMEM-resident
                pl.BlockSpec((Hp, G), lambda b, t: (0, 0)),                          # Wh, VMEM-resident
                pl.BlockSpec((1, G), lambda b, t: (0, 0)),                           # bias, VMEM-resident
                pl.BlockSpec((batch_tile, 2 * Hp), lambda b, t: (b, 0)),             # packed (h0, c0)
            ],
            out_specs=[
                pl.BlockSpec((time_block, batch_tile, Hp), lambda b, t: (t, b, 0)),  # per-step hidden
                pl.BlockSpec((batch_tile, 2 * Hp), lambda b, t: (b, 0)),             # packed final (h, c)
            ],
            scratch_shapes=[
                pltpu.VMEM((batch_tile, Hp), jnp.bfloat16),   # h carry
                pltpu.VMEM((batch_tile, Hp), jnp.float32),    # c carry
            ],
        ),
        input_output_aliases={4: 1},   # reuse the state slab buffer for the final state
        compiler_params=pltpu.CompilerParams(
            dimension_semantics=("parallel", "arbitrary"),
            vmem_limit_bytes=_vmem_limit_bytes(time_block, batch_tile, Ip, Hp),
        ),
    )(x_pad, wx, wh, bias, state_in)
    return y, state_out


# ---------------------------------------------------------------------------
# Module wrapper (mirrors the PyTorch UnrolledLSTMCell forward semantics).
# ---------------------------------------------------------------------------
class UnrolledLSTMCellPallas:
    """JAX/Pallas port of UnrolledLSTMCell (forward pass only)."""

    def __init__(self, input_size: int, hidden_size: int, batch_first: bool, key):
        self.input_size = input_size
        self.hidden_size = hidden_size
        self.batch_first = batch_first
        self.Hp = _round_up(hidden_size, 128)   # lane-aligned hidden size
        self.Ip = _round_up(input_size, 8)      # sublane-aligned input size

        # Deterministic synthetic init (mimics nn.Linear uniform(-bound, bound)).
        in_features = input_size + hidden_size
        bound = 1.0 / (in_features ** 0.5)
        keys = jax.random.split(key, 8)
        # PyTorch Linear weight is (out, in); we store transposed (in, out).
        # Gate order: [forget, update, cand, output].
        ws = [jax.random.uniform(keys[i], (in_features, hidden_size),
                                 minval=-bound, maxval=bound, dtype=jnp.float32)
              for i in range(4)]
        bs = [jax.random.uniform(keys[4 + i], (hidden_size,),
                                 minval=-bound, maxval=bound, dtype=jnp.float32)
              for i in range(4)]

        I, H, Hp, Ip = input_size, hidden_size, self.Hp, self.Ip

        # Unpadded f32 copies (used by the pure-JAX reference).
        self.wx_f32 = jnp.concatenate([w[:I] for w in ws], axis=-1)   # (I, 4H)
        self.wh_f32 = jnp.concatenate([w[I:] for w in ws], axis=-1)   # (H, 4H)
        self.b_f32 = jnp.concatenate(bs, axis=-1)                     # (4H,)

        # Kernel copies: each gate padded to a 128-lane boundary; operands in bf16.
        def pad_gate_cols(w):   # (rows, H) -> (rows, Hp)
            return jnp.pad(w, ((0, 0), (0, Hp - H)))

        wx_p = jnp.concatenate(
            [jnp.pad(pad_gate_cols(w[:I]), ((0, Ip - I), (0, 0))) for w in ws], axis=-1)  # (Ip, 4Hp)
        wh_p = jnp.concatenate(
            [jnp.pad(pad_gate_cols(w[I:]), ((0, Hp - H), (0, 0))) for w in ws], axis=-1)  # (Hp, 4Hp)
        b_p = jnp.concatenate([jnp.pad(b, (0, Hp - H)) for b in bs], axis=-1)             # (4Hp,)

        self.wx_bf16 = wx_p.astype(jnp.bfloat16)
        self.wh_bf16 = wh_p.astype(jnp.bfloat16)
        self.b_padded = b_p[None, :]    # (1, 4Hp) f32

    # --- shared fused path (T timesteps, padded/tiled) ------------------------------
    def _run_fused(self, x_seq, h2d, c2d):
        T, B, _ = x_seq.shape
        H, Hp, I, Ip = self.hidden_size, self.Hp, self.input_size, self.Ip
        Bp8 = _round_up(B, 8)
        Bt = _pick_batch_tile(Bp8)
        Bp = _round_up(Bp8, Bt)
        Tc = _pick_time_block(T)

        x_p = jnp.zeros((T, Bp, Ip), jnp.bfloat16)
        x_p = x_p.at[:, :B, :I].set(x_seq.astype(jnp.bfloat16))
        h_p = jnp.zeros((Bp, Hp), jnp.float32).at[:B, :H].set(h2d)
        c_p = jnp.zeros((Bp, Hp), jnp.float32).at[:B, :H].set(c2d)
        state_in = jnp.concatenate([h_p, c_p], axis=-1)   # (Bp, 2Hp) lane-dense slab

        y_p, state_out = _lstm_seq_pallas(
            x_p, self.wx_bf16, self.wh_bf16, self.b_padded, state_in,
            batch_tile=Bt, time_block=Tc)

        y = y_p[:, :B, :H].astype(jnp.float32)
        h_new = state_out[:B, :H]
        c_new = state_out[:B, Hp:Hp + H]
        return y, h_new, c_new

    # --- single-step call: same semantics as the PyTorch module forward --------------
    def __call__(self, x, state):
        hidden, cell = state
        if self.batch_first:
            hidden = jnp.swapaxes(hidden, 0, 1)
            cell = jnp.swapaxes(cell, 0, 1)

        x_seq = x.reshape(1, -1, self.input_size)          # single timestep
        h2d = hidden.reshape(-1, self.hidden_size)
        c2d = cell.reshape(-1, self.hidden_size)

        _, h_new2d, c_new2d = self._run_fused(x_seq, h2d, c2d)

        updated_hidden = h_new2d.reshape(hidden.shape)
        updated_cell = c_new2d.reshape(cell.shape)
        if self.batch_first:
            updated_hidden = jnp.swapaxes(updated_hidden, 0, 1)
            updated_cell = jnp.swapaxes(updated_cell, 0, 1)
        return updated_hidden, (updated_hidden, updated_cell)

    # --- fused multi-step unroll (the way the cell is used in practice) --------------
    def run_sequence(self, x_seq, state):
        """x_seq: time-major (T, B, input_size); state in the same layout as __call__."""
        hidden, cell = state
        if self.batch_first:
            hidden = jnp.swapaxes(hidden, 0, 1)
            cell = jnp.swapaxes(cell, 0, 1)
        h2d = hidden.reshape(-1, self.hidden_size)
        c2d = cell.reshape(-1, self.hidden_size)

        y, h_new2d, c_new2d = self._run_fused(x_seq, h2d, c2d)

        updated_hidden = h_new2d.reshape(hidden.shape)
        updated_cell = c_new2d.reshape(cell.shape)
        if self.batch_first:
            updated_hidden = jnp.swapaxes(updated_hidden, 0, 1)
            updated_cell = jnp.swapaxes(updated_cell, 0, 1)
        return y, (updated_hidden, updated_cell)


# ---------------------------------------------------------------------------
# Pure-JAX reference.  Same LSTM math; precision-matched to the kernel
# (bf16 matmul operands with f32 accumulation, bf16 hidden carry, f32 cell).
# ---------------------------------------------------------------------------
def _reference_step(module, x2d, h2d, c2d):
    bf16 = jnp.bfloat16
    gates = (
        jnp.dot(x2d.astype(bf16), module.wx_f32.astype(bf16),
                preferred_element_type=jnp.float32)
        + jnp.dot(h2d.astype(bf16), module.wh_f32.astype(bf16),
                  preferred_element_type=jnp.float32)
        + module.b_f32
    )
    H = module.hidden_size
    f = jax.nn.sigmoid(gates[:, 0 * H:1 * H])
    u = jax.nn.sigmoid(gates[:, 1 * H:2 * H])
    g = jnp.tanh(gates[:, 2 * H:3 * H])
    o = jax.nn.sigmoid(gates[:, 3 * H:4 * H])
    c_new = f * c2d + u * g
    h_new = o * jnp.tanh(c_new)
    # Mirror the kernel's bf16 hidden carry so the check is precision-matched.
    h_new = h_new.astype(bf16).astype(jnp.float32)
    return h_new, c_new


def _reference_forward(module, x, state):
    hidden, cell = state
    if module.batch_first:
        hidden = jnp.swapaxes(hidden, 0, 1)
        cell = jnp.swapaxes(cell, 0, 1)
    x2d = x.reshape(-1, module.input_size)
    h2d = hidden.reshape(-1, module.hidden_size)
    c2d = cell.reshape(-1, module.hidden_size)
    h_new2d, c_new2d = _reference_step(module, x2d, h2d, c2d)
    h_new = h_new2d.reshape(hidden.shape)
    c_new = c_new2d.reshape(cell.shape)
    if module.batch_first:
        h_new = jnp.swapaxes(h_new, 0, 1)
        c_new = jnp.swapaxes(c_new, 0, 1)
    return h_new, (h_new, c_new)


if __name__ == "__main__":
    input_size, hidden_size, batch, seq = 16, 32, 2, 8

    key = jax.random.PRNGKey(0)
    k_param, k_x, k_h, k_c, k_seq = jax.random.split(key, 5)

    module = UnrolledLSTMCellPallas(input_size, hidden_size, batch_first=True, key=k_param)

    # --- single-step call (mirrors the PyTorch module forward) ---
    x = jax.random.normal(k_x, (1, batch, input_size), dtype=jnp.float32)
    h0 = jax.random.normal(k_h, (batch, 1, hidden_size), dtype=jnp.float32)
    c0 = jax.random.normal(k_c, (batch, 1, hidden_size), dtype=jnp.float32)

    out_hidden, (new_hidden, new_cell) = module(x, (h0, c0))
    jax.block_until_ready((out_hidden, new_hidden, new_cell))

    ref_hidden, (ref_h, ref_c) = _reference_forward(module, x, (h0, c0))
    assert out_hidden.shape == (batch, 1, hidden_size)
    assert new_cell.shape == (batch, 1, hidden_size)
    assert jnp.allclose(out_hidden, ref_hidden, atol=1e-2, rtol=1e-2)
    assert jnp.allclose(new_cell, ref_c, atol=1e-2, rtol=1e-2)

    # --- fused multi-step unroll: one pallas_call over the whole sequence ---
    x_seq = jax.random.normal(k_seq, (seq, batch, input_size), dtype=jnp.float32)
    ys, (hT, cT) = module.run_sequence(x_seq, (h0, c0))
    jax.block_until_ready((ys, hT, cT))

    h_ref, c_ref = h0, c0
    ys_ref = []
    for t in range(seq):
        y_t, (h_ref, c_ref) = _reference_forward(module, x_seq[t:t + 1], (h_ref, c_ref))
        ys_ref.append(y_t[:, 0, :])
    ys_ref = jnp.stack(ys_ref, axis=0)

    assert ys.shape == (seq, batch, hidden_size)
    assert hT.shape == (batch, 1, hidden_size)
    assert jnp.allclose(ys, ys_ref, atol=2e-2, rtol=2e-2)
    assert jnp.allclose(hT, h_ref, atol=2e-2, rtol=2e-2)
    assert jnp.allclose(cT, c_ref, atol=2e-2, rtol=2e-2)

    print("KERNEL_OK")
</pallas_src>

<mosaic_0001>
module attributes {stable_mosaic.version = 11 : i64} {
  func.func @_lstm_seq_kernel(%arg0: i32, %arg1: i32, %arg2: memref<1x8x16xbf16, #tpu.memory_space<vmem>>, %arg3: memref<16x512xbf16, #tpu.memory_space<vmem>>, %arg4: memref<128x512xbf16, #tpu.memory_space<vmem>>, %arg5: memref<1x512xf32, #tpu.memory_space<vmem>>, %arg6: memref<8x256xf32, #tpu.memory_space<vmem>>, %arg7: memref<1x8x128xbf16, #tpu.memory_space<vmem>>, %arg8: memref<8x256xf32, #tpu.memory_space<vmem>>, %arg9: memref<8x128xbf16, #tpu.memory_space<vmem>>, %arg10: memref<8x128xf32, #tpu.memory_space<vmem>>) attributes {dimension_semantics = [#tpu.dimension_semantics<parallel>, #tpu.dimension_semantics<arbitrary>], iteration_bounds = array<i64: 1, 1>, scalar_prefetch = 0 : i64, scratch_operands = 2 : i64, tpu.core_type = #tpu.core_type<tc>, window_params = [{transform_indices = @transform_0, window_bounds = array<i64: 1, 8, 16>}, {pipeline_mode = #tpu.pipeline_mode<synchronous>, transform_indices = @transform_1, window_bounds = array<i64: 16, 512>}, {pipeline_mode = #tpu.pipeline_mode<synchronous>, transform_indices = @transform_2, window_bounds = array<i64: 128, 512>}, {pipeline_mode = #tpu.pipeline_mode<synchronous>, transform_indices = @transform_3, window_bounds = array<i64: 1, 512>}, {transform_indices = @transform_4, window_bounds = array<i64: 8, 256>}, {transform_indices = @transform_5, window_bounds = array<i64: 1, 8, 128>}, {transform_indices = @transform_6, window_bounds = array<i64: 8, 256>}]} {
    %c0_i32 = arith.constant 0 : i32
    %0 = arith.cmpi eq, %arg1, %c0_i32 : i32
    %1 = arith.extui %0 : i1 to i32
    %c0_i32_0 = arith.constant 0 : i32
    %2 = arith.cmpi ne, %1, %c0_i32_0 : i32
    scf.if %2 {
      %c0_31 = arith.constant 0 : index
      %c0_32 = arith.constant 0 : index
      %58 = vector.load %arg6[%c0_31, %c0_32] : memref<8x256xf32, #tpu.memory_space<vmem>>, vector<8x128xf32>
      %59 = arith.truncf %58 : vector<8x128xf32> to vector<8x128xbf16>
      %c0_33 = arith.constant 0 : index
      %c0_34 = arith.constant 0 : index
      %60 = vector.load %arg9[%c0_33, %c0_34] : memref<8x128xbf16, #tpu.memory_space<vmem>>, vector<8x128xbf16>
      tpu.vector_store %arg9[%c0_33, %c0_34], %59 {strides = array<i32>} : memref<8x128xbf16, #tpu.memory_space<vmem>>, vector<8x128xbf16>,
      %c0_35 = arith.constant 0 : index
      %c128 = arith.constant 128 : index
      %61 = vector.load %arg6[%c0_35, %c128] : memref<8x256xf32, #tpu.memory_space<vmem>>, vector<8x128xf32>
      %c0_36 = arith.constant 0 : index
      %c0_37 = arith.constant 0 : index
      %62 = vector.load %arg10[%c0_36, %c0_37] : memref<8x128xf32, #tpu.memory_space<vmem>>, vector<8x128xf32>
      tpu.vector_store %arg10[%c0_36, %c0_37], %61 {strides = array<i32>} : memref<8x128xf32, #tpu.memory_space<vmem>>, vector<8x128xf32>,
    } else {
    }
    %c0_i32_1 = arith.constant 0 : i32
    %c0 = arith.constant 0 : index
    %c0_2 = arith.constant 0 : index
    %3 = vector.load %arg9[%c0, %c0_2] : memref<8x128xbf16, #tpu.memory_space<vmem>>, vector<8x128xbf16>
    %c0_3 = arith.constant 0 : index
    %c0_4 = arith.constant 0 : index
    %4 = vector.load %arg10[%c0_3, %c0_4] : memref<8x128xf32, #tpu.memory_space<vmem>>, vector<8x128xf32>
    %5 = arith.index_cast %c0_i32_1 : i32 to index
    %c0_5 = arith.constant 0 : index
    %c0_6 = arith.constant 0 : index
    %6 = vector.load %arg2[%5, %c0_5, %c0_6] : memref<1x8x16xbf16, #tpu.memory_space<vmem>>, vector<1x8x16xbf16>
    %7 = vector.shape_cast %6 : vector<1x8x16xbf16> to vector<8x16xbf16>
    %c0_7 = arith.constant 0 : index
    %c0_8 = arith.constant 0 : index
    %8 = vector.load %arg3[%c0_7, %c0_8] : memref<16x512xbf16, #tpu.memory_space<vmem>>, vector<16x512xbf16>
    %cst = arith.constant dense<0.000000e+00> : vector<8x512xf32>
    %9 = tpu.matmul %7, %8, %cst {dimension_numbers = #tpu.dot_dimension_numbers<[1], [0], [0], [1], [0, 0, 1, 1], [], []>} : vector<8x16xbf16>, vector<16x512xbf16>, vector<8x512xf32> -> vector<8x512xf32>
    %c0_9 = arith.constant 0 : index
    %c0_10 = arith.constant 0 : index
    %10 = vector.load %arg4[%c0_9, %c0_10] : memref<128x512xbf16, #tpu.memory_space<vmem>>, vector<128x512xbf16>
    %cst_11 = arith.constant dense<0.000000e+00> : vector<8x512xf32>
    %11 = tpu.matmul %3, %10, %cst_11 {dimension_numbers = #tpu.dot_dimension_numbers<[1], [0], [0], [1], [0, 0, 1, 1], [], []>} : vector<8x128xbf16>, vector<128x512xbf16>, vector<8x512xf32> -> vector<8x512xf32>
    %12 = arith.addf %9, %11 : vector<8x512xf32>
    %c0_12 = arith.constant 0 : index
    %c0_13 = arith.constant 0 : index
    %13 = vector.load %arg5[%c0_12, %c0_13] : memref<1x512xf32, #tpu.memory_space<vmem>>, vector<1x512xf32>
    %14 = vector.broadcast %13 : vector<1x512xf32> to vector<8x512xf32>
    %15 = arith.addf %12, %14 : vector<8x512xf32>
    %16 = vector.extract_strided_slice %15 {offsets = [0, 0], sizes = [8, 128], strides = [1, 1]} : vector<8x512xf32> to vector<8x128xf32>
    %cst_14 = arith.constant 5.000000e-01 : f32
    %17 = vector.broadcast %cst_14 : f32 to vector<8x128xf32>
    %18 = arith.mulf %17, %16 : vector<8x128xf32>
    %19 = math.tanh %18 : vector<8x128xf32>
    %cst_15 = arith.constant 5.000000e-01 : f32
    %20 = vector.broadcast %cst_15 : f32 to vector<8x128xf32>
    %21 = arith.mulf %20, %19 : vector<8x128xf32>
    %cst_16 = arith.constant 5.000000e-01 : f32
    %22 = vector.broadcast %cst_16 : f32 to vector<8x128xf32>
    %23 = arith.addf %21, %22 : vector<8x128xf32>
    %24 = vector.extract_strided_slice %15 {offsets = [0, 128], sizes = [8, 128], strides = [1, 1]} : vector<8x512xf32> to vector<8x128xf32>
    %cst_17 = arith.constant 5.000000e-01 : f32
    %25 = vector.broadcast %cst_17 : f32 to vector<8x128xf32>
    %26 = arith.mulf %25, %24 : vector<8x128xf32>
    %27 = math.tanh %26 : vector<8x128xf32>
    %cst_18 = arith.constant 5.000000e-01 : f32
    %28 = vector.broadcast %cst_18 : f32 to vector<8x128xf32>
    %29 = arith.mulf %28, %27 : vector<8x128xf32>
    %cst_19 = arith.constant 5.000000e-01 : f32
    %30 = vector.broadcast %cst_19 : f32 to vector<8x128xf32>
    %31 = arith.addf %29, %30 : vector<8x128xf32>
    %32 = vector.extract_strided_slice %15 {offsets = [0, 256], sizes = [8, 128], strides = [1, 1]} : vector<8x512xf32> to vector<8x128xf32>
    %33 = math.tanh %32 : vector<8x128xf32>
    %34 = vector.extract_strided_slice %15 {offsets = [0, 384], sizes = [8, 128], strides = [1, 1]} : vector<8x512xf32> to vector<8x128xf32>
    %cst_20 = arith.constant 5.000000e-01 : f32
    %35 = vector.broadcast %cst_20 : f32 to vector<8x128xf32>
    %36 = arith.mulf %35, %34 : vector<8x128xf32>
    %37 = math.tanh %36 : vector<8x128xf32>
    %cst_21 = arith.constant 5.000000e-01 : f32
    %38 = vector.broadcast %cst_21 : f32 to vector<8x128xf32>
    %39 = arith.mulf %38, %37 : vector<8x128xf32>
    %cst_22 = arith.constant 5.000000e-01 : f32
    %40 = vector.broadcast %cst_22 : f32 to vector<8x128xf32>
    %41 = arith.addf %39, %40 : vector<8x128xf32>
    %42 = arith.mulf %23, %4 : vector<8x128xf32>
    %43 = arith.mulf %31, %33 : vector<8x128xf32>
    %44 = arith.addf %42, %43 : vector<8x128xf32>
    %45 = math.tanh %44 : vector<8x128xf32>
    %46 = arith.mulf %41, %45 : vector<8x128xf32>
    %47 = arith.truncf %46 : vector<8x128xf32> to vector<8x128xbf16>
    %c0_23 = arith.constant 0 : index
    %c0_24 = arith.constant 0 : index
    %48 = vector.load %arg9[%c0_23, %c0_24] : memref<8x128xbf16, #tpu.memory_space<vmem>>, vector<8x128xbf16>
    tpu.vector_store %arg9[%c0_23, %c0_24], %47 {strides = array<i32>} : memref<8x128xbf16, #tpu.memory_space<vmem>>, vector<8x128xbf16>,
    %c0_25 = arith.constant 0 : index
    %c0_26 = arith.constant 0 : index
    %49 = vector.load %arg10[%c0_25, %c0_26] : memref<8x128xf32, #tpu.memory_space<vmem>>, vector<8x128xf32>
    tpu.vector_store %arg10[%c0_25, %c0_26], %44 {strides = array<i32>} : memref<8x128xf32, #tpu.memory_space<vmem>>, vector<8x128xf32>,
    %50 = arith.truncf %46 : vector<8x128xf32> to vector<8x128xbf16>
    %51 = arith.index_cast %c0_i32_1 : i32 to index
    %c0_27 = arith.constant 0 : index
    %c0_28 = arith.constant 0 : index
    %52 = vector.load %arg7[%51, %c0_27, %c0_28] : memref<1x8x128xbf16, #tpu.memory_space<vmem>>, vector<1x8x128xbf16>
    %53 = vector.shape_cast %52 : vector<1x8x128xbf16> to vector<8x128xbf16>
    %54 = vector.shape_cast %50 : vector<8x128xbf16> to vector<1x8x128xbf16>
    tpu.vector_store %arg7[%51, %c0_27, %c0_28], %54 {strides = array<i32>} : memref<1x8x128xbf16, #tpu.memory_space<vmem>>, vector<1x8x128xbf16>,
    %c1_i32 = arith.constant 1 : i32
    %c0_i32_29 = arith.constant 0 : i32
    %55 = arith.cmpi eq, %arg1, %c0_i32_29 : i32
    %56 = arith.extui %55 : i1 to i32
    %c0_i32_30 = arith.constant 0 : i32
    %57 = arith.cmpi ne, %56, %c0_i32_30 : i32
    scf.if %57 {
      %c0_31 = arith.constant 0 : index
      %c0_32 = arith.constant 0 : index
      %58 = vector.load %arg9[%c0_31, %c0_32] : memref<8x128xbf16, #tpu.memory_space<vmem>>, vector<8x128xbf16>
      %59 = arith.extf %58 : vector<8x128xbf16> to vector<8x128xf32>
      %c0_33 = arith.constant 0 : index
      %c0_34 = arith.constant 0 : index
      %60 = vector.load %arg8[%c0_33, %c0_34] : memref<8x256xf32, #tpu.memory_space<vmem>>, vector<8x128xf32>
      tpu.vector_store %arg8[%c0_33, %c0_34], %59 {strides = array<i32>} : memref<8x256xf32, #tpu.memory_space<vmem>>, vector<8x128xf32>,
      %c0_35 = arith.constant 0 : index
      %c0_36 = arith.constant 0 : index
      %61 = vector.load %arg10[%c0_35, %c0_36] : memref<8x128xf32, #tpu.memory_space<vmem>>, vector<8x128xf32>
      %c0_37 = arith.constant 0 : index
      %c128 = arith.constant 128 : index
      %62 = vector.load %arg8[%c0_37, %c128] : memref<8x256xf32, #tpu.memory_space<vmem>>, vector<8x128xf32>
      tpu.vector_store %arg8[%c0_37, %c128], %61 {strides = array<i32>} : memref<8x256xf32, #tpu.memory_space<vmem>>, vector<8x128xf32>,
    } else {
    }
    return
  }
  func.func @transform_0(%arg0: i32, %arg1: i32) -> (i32, i32, i32) {
    %c0_i32 = arith.constant 0 : i32
    %c0_i32_0 = arith.constant 0 : i32
    return %arg1, %arg0, %c0_i32 : i32, i32, i32
  }
  func.func @transform_1(%arg0: i32, %arg1: i32) -> (i32, i32) {
    %c0_i32 = arith.constant 0 : i32
    %c0_i32_0 = arith.constant 0 : i32
    %c0_i32_1 = arith.constant 0 : i32
    return %c0_i32, %c0_i32_0 : i32, i32
  }
  func.func @transform_2(%arg0: i32, %arg1: i32) -> (i32, i32) {
    %c0_i32 = arith.constant 0 : i32
    %c0_i32_0 = arith.constant 0 : i32
    %c0_i32_1 = arith.constant 0 : i32
    return %c0_i32, %c0_i32_0 : i32, i32
  }
  func.func @transform_3(%arg0: i32, %arg1: i32) -> (i32, i32) {
    %c0_i32 = arith.constant 0 : i32
    %c0_i32_0 = arith.constant 0 : i32
    %c0_i32_1 = arith.constant 0 : i32
    return %c0_i32, %c0_i32_0 : i32, i32
  }
  func.func @transform_4(%arg0: i32, %arg1: i32) -> (i32, i32) {
    %c0_i32 = arith.constant 0 : i32
    %c0_i32_0 = arith.constant 0 : i32
    return %arg0, %c0_i32 : i32, i32
  }
  func.func @transform_5(%arg0: i32, %arg1: i32) -> (i32, i32, i32) {
    %c0_i32 = arith.constant 0 : i32
    %c0_i32_0 = arith.constant 0 : i32
    return %arg1, %arg0, %c0_i32 : i32, i32, i32
  }
  func.func @transform_6(%arg0: i32, %arg1: i32) -> (i32, i32) {
    %c0_i32 = arith.constant 0 : i32
    %c0_i32_0 = arith.constant 0 : i32
    return %arg0, %c0_i32 : i32, i32
  }
}

</mosaic_0001>

<llo_original>
// kernel: _lstm_seq_pallas.1
$region0: #{_lstm_seq_pallas.1}
  #allocation0 [shape = 'u32[]', space=smem, size = 0x4, offset = 0x4, fixed_abs, tag = 'smem constant byte address 0x4 - core index']
  #allocation1 [shape = 'u32[72,128]{1,0:T(1,128)}', space=vmem, size = 0x9000, scoped, tag = 'internal scratch']
  #allocation2 [shape = 'bf16[8,128]{1,0:T(8,128)(2,1)}', space=vmem, size = 0x800, scoped, tag = 'scratch operand']
  #allocation3 [shape = 'f32[8,128]{1,0:T(8,128)}', space=vmem, size = 0x1000, scoped, tag = 'scratch operand']
  %s0 = inlined_call_operand.hbm [shape: bf16[1,8,16], index: 0, kind: input, shape index: {}]
  %s1 = inlined_call_operand.vmem [shape: bf16[16,512], index: 1, kind: input, shape index: {}]
  %s2 = inlined_call_operand.hbm [shape: bf16[128,512], index: 2, kind: input, shape index: {}]
  %s3 = inlined_call_operand.hbm [shape: f32[1,512], index: 3, kind: input, shape index: {}]
  %s4 = inlined_call_operand.hbm [shape: f32[8,256], index: 4, kind: input, shape index: {}, may-alias: {4,6}]
  %s5 = inlined_call_operand.hbm [shape: bf16[1,8,128], index: 5, kind: output, shape index: {0}]
  %s6 = inlined_call_operand.hbm [shape: f32[8,256], index: 6, kind: output, shape index: {1}, may-alias: {4,6}]
  %7 = xla_tuple %s5, %s6
  %s8 = sld [smem:[#allocation0]]
  $region62: #{_lstm_seq_pallas.1} parent=0
    _
  %s10 = ssub.s32 1, %s8
  %s11 = scalar_select 0, %s10, %s8
  $region1: #{_lstm_seq_pallas.1} parent=0
    #allocation4 [shape = 'u8[2048]{0}', space=vmem, size = 0x800, scoped, tag = 'input window, operand 0, single buffered']
    #allocation5 [shape = 's32[1]{0}', space=sflag, size = 0x4, scoped, tag = 'scoped memory for _lstm_seq_pallas.1']
    #allocation6 [shape = 's32[1]{0}', space=sflag, size = 0x4, scoped, tag = 'scoped memory for _lstm_seq_pallas.1']
    #allocation7 [shape = 'u8[131072]{0}', space=vmem, size = 0x20000, scoped, tag = 'input window, operand 2, single buffered']
    #allocation8 [shape = 's32[1]{0}', space=sflag, size = 0x4, scoped, tag = 'scoped memory for _lstm_seq_pallas.1']
    #allocation9 [shape = 'u8[2048]{0}', space=vmem, size = 0x800, scoped, tag = 'input window, operand 3, single buffered']
    #allocation10 [shape = 'u8[8192]{0}', space=vmem, size = 0x2000, scoped, tag = 'input window, operand 4, single buffered']
    #allocation11 [shape = 's32[1]{0}', space=sflag, size = 0x4, scoped, tag = 'scoped memory for _lstm_seq_pallas.1']
    #allocation12 [shape = 'u8[2048]{0}', space=vmem, size = 0x800, scoped, tag = 'output window, operand 0, single buffered']
    #allocation13 [shape = 'u8[8192]{0}', space=vmem, size = 0x2000, scoped, tag = 'output window, operand 1, single buffered']
    #allocation14 [shape = 's32[1]{0}', space=sflag, size = 0x4, scoped, tag = 'scoped memory for _lstm_seq_pallas.1']
    %12 = vsyncpa [#allocation5], 0
    %13 = vsyncpa [#allocation8], 0
    %14 = vsyncpa [#allocation11], 0
    %15 = vsyncpa [#allocation6], 0
    %16 = vsyncpa [#allocation14], 0
    // Predicated region
    $region2: #{_lstm_seq_pallas.1} parent=1 // pred_check
      _
    $region3: #{_lstm_seq_pallas.1} parent=1 // pred_check_branch
      %18 = sbr.rel (0) target = $region5
    $region4: #{_lstm_seq_pallas.1} parent=1 // pred_region
      %20 = vsyncadd [#allocation5], 0
      %s22 = sshll.u32 %s0, 4
      %s23 = int_to_ptr.hbm [resolvable:$true] %s22
      %s24 = sshll.u32 [#allocation4], 4
      %s25 = int_to_ptr.vmem [resolvable:$true] %s24
      %27 = dma.hbm_to_vmem [thread:$0]  %s23, 64, %s25, [#allocation5]
    $region5: #{_lstm_seq_pallas.1} parent=1 // pred_fallthru
      _
    // Predicated region
    $region6: #{_lstm_seq_pallas.1} parent=1 // pred_check
      _
    $region7: #{_lstm_seq_pallas.1} parent=1 // pred_check_branch
      %29 = sbr.rel (0) target = $region9
    $region8: #{_lstm_seq_pallas.1} parent=1 // pred_region
      _
    $region9: #{_lstm_seq_pallas.1} parent=1 // pred_fallthru
      _
    // Predicated region
    $region10: #{_lstm_seq_pallas.1} parent=1 // pred_check
      _
    $region11: #{_lstm_seq_pallas.1} parent=1 // pred_check_branch
      %31 = sbr.rel (0) target = $region13
    $region12: #{_lstm_seq_pallas.1} parent=1 // pred_region
      %33 = vsyncadd [#allocation8], 0
      %s34 = sshll.u32 %s2, 4
      %s35 = int_to_ptr.hbm [resolvable:$true] %s34
      %s36 = sshll.u32 [#allocation7], 4
      %s37 = int_to_ptr.vmem [resolvable:$true] %s36
      %42 = dma.hbm_to_vmem [thread:$0]  %s35, 4096, %s37, [#allocation8], 256, 256, 16
    $region13: #{_lstm_seq_pallas.1} parent=1 // pred_fallthru
      _
    // Predicated region
    $region14: #{_lstm_seq_pallas.1} parent=1 // pred_check
      _
    $region15: #{_lstm_seq_pallas.1} parent=1 // pred_check_branch
      %44 = sbr.rel (0) target = $region17
    $region16: #{_lstm_seq_pallas.1} parent=1 // pred_region
      %46 = vsyncadd [#allocation8], 0
      %s48 = sshll.u32 %s3, 4
      %s49 = int_to_ptr.hbm [resolvable:$true] %s48
      %s50 = sshll.u32 [#allocation9], 4
      %s51 = int_to_ptr.vmem [resolvable:$true] %s50
      %53 = dma.hbm_to_vmem [thread:$0]  %s49, 64, %s51, [#allocation8]
    $region17: #{_lstm_seq_pallas.1} parent=1 // pred_fallthru
      _
    // Predicated region
    $region18: #{_lstm_seq_pallas.1} parent=1 // pred_check
      _
    $region19: #{_lstm_seq_pallas.1} parent=1 // pred_check_branch
      %55 = sbr.rel (0) target = $region21
    $region20: #{_lstm_seq_pallas.1} parent=1 // pred_region
      %57 = vsyncadd [#allocation11], 0
      %s59 = sshll.u32 %s4, 4
      %s60 = int_to_ptr.hbm [resolvable:$true] %s59
      %s61 = sshll.u32 [#allocation10], 4
      %s62 = int_to_ptr.vmem [resolvable:$true] %s61
      %64 = dma.hbm_to_vmem [thread:$0]  %s60, 256, %s62, [#allocation11]
    $region21: #{_lstm_seq_pallas.1} parent=1 // pred_fallthru
      _
    // Predicated region
    $region22: #{_lstm_seq_pallas.1} parent=1 // pred_check
      _
    $region23: #{_lstm_seq_pallas.1} parent=1 // pred_check_branch
      %66 = sbr.rel (0) target = $region25
    $region24: #{_lstm_seq_pallas.1} parent=1 // pred_region
      %68 = dma.done [#allocation5], 64
    $region25: #{_lstm_seq_pallas.1} parent=1 // pred_fallthru
      _
    // Predicated region
    $region26: #{_lstm_seq_pallas.1} parent=1 // pred_check
      _
    $region27: #{_lstm_seq_pallas.1} parent=1 // pred_check_branch
      %70 = sbr.rel (0) target = $region29
    $region28: #{_lstm_seq_pallas.1} parent=1 // pred_region
      %72 = dma.done [#allocation8], 4096
    $region29: #{_lstm_seq_pallas.1} parent=1 // pred_fallthru
      _
    // Predicated region
    $region30: #{_lstm_seq_pallas.1} parent=1 // pred_check
      _
    $region31: #{_lstm_seq_pallas.1} parent=1 // pred_check_branch
      %74 = sbr.rel (0) target = $region33
    $region32: #{_lstm_seq_pallas.1} parent=1 // pred_region
      %76 = dma.done [#allocation8], 64
    $region33: #{_lstm_seq_pallas.1} parent=1 // pred_fallthru
      _
    // Predicated region
    $region34: #{_lstm_seq_pallas.1} parent=1 // pred_check
      _
    $region35: #{_lstm_seq_pallas.1} parent=1 // pred_check_branch
      %78 = sbr.rel (0) target = $region37
    $region36: #{_lstm_seq_pallas.1} parent=1 // pred_region
      %80 = dma.done [#allocation11], 256
    $region37: #{_lstm_seq_pallas.1} parent=1 // pred_fallthru
      _
    %p82 = scmp.eq.s32.totalorder 0, 0
    // Predicated region
    $region38: #{_lstm_seq_pallas.1} parent=1 // pred_check
      %p83 = pneg %p82
    $region39: #{_lstm_seq_pallas.1} parent=1 // pred_check_branch
      %85 = sbr.rel (%p83) target = $region41
    $region40: #{_lstm_seq_pallas.1} parent=1 // pred_region
      %v86 = vld [vmem:[#allocation10] sm:$0xff]
      %v87 = vpack.c.bf16 %v86, %v86
      %88 = vst [vmem:[#allocation2] sm:$0xf] %v87
      %v89 = vld [vmem:[#allocation10 + $0x8] sm:$0xff]
      %90 = vst [vmem:[#allocation3] sm:$0xff] %v89
    $region41: #{_lstm_seq_pallas.1} parent=1 // pred_fallthru
      _
    %v91 = vld [vmem:[#allocation2] sm:$0xf]
    %v92 = vld [vmem:[#allocation3] sm:$0xff]
    %v93 = vld [vmem:[#allocation4] sm:$0xf]
    %v94 = vld [vmem:[%s1] sm:$0xff]
    %v95 = vld [vmem:[%s1 + $0x8] sm:$0xff]
    %v96 = vld [vmem:[%s1 + $0x10] sm:$0xff]
    %v97 = vld [vmem:[%s1 + $0x18] sm:$0xff]
    %v98 = vld [vmem:[#allocation7] sm:$0xff]
    %v99 = vld [vmem:[#allocation7 + $0x8] sm:$0xff]
    %v100 = vld [vmem:[#allocation7 + $0x10] sm:$0xff]
    %v101 = vld [vmem:[#allocation7 + $0x18] sm:$0xff]
    %v102 = vld [vmem:[#allocation7 + $0x20] sm:$0xff]
    %v103 = vld [vmem:[#allocation7 + $0x28] sm:$0xff]
    %v104 = vld [vmem:[#allocation7 + $0x30] sm:$0xff]
    %v105 = vld [vmem:[#allocation7 + $0x38] sm:$0xff]
    %v106 = vld [vmem:[#allocation7 + $0x40] sm:$0xff]
    %v107 = vld [vmem:[#allocation7 + $0x48] sm:$0xff]
    %v108 = vld [vmem:[#allocation7 + $0x50] sm:$0xff]
    %v109 = vld [vmem:[#allocation7 + $0x58] sm:$0xff]
    %v110 = vld [vmem:[#allocation7 + $0x60] sm:$0xff]
    %v111 = vld [vmem:[#allocation7 + $0x68] sm:$0xff]
    %v112 = vld [vmem:[#allocation7 + $0x70] sm:$0xff]
    %v113 = vld [vmem:[#allocation7 + $0x78] sm:$0xff]
    %v114 = vld [vmem:[#allocation7 + $0x80] sm:$0xff]
    %v115 = vld [vmem:[#allocation7 + $0x88] sm:$0xff]
    %v116 = vld [vmem:[#allocation7 + $0x90] sm:$0xff]
    %v117 = vld [vmem:[#allocation7 + $0x98] sm:$0xff]
    %v118 = vld [vmem:[#allocation7 + $0xa0] sm:$0xff]
    %v119 = vld [vmem:[#allocation7 + $0xa8] sm:$0xff]
    %v120 = vld [vmem:[#allocation7 + $0xb0] sm:$0xff]
    %v121 = vld [vmem:[#allocation7 + $0xb8] sm:$0xff]
    %v122 = vld [vmem:[#allocation7 + $0xc0] sm:$0xff]
    %v123 = vld [vmem:[#allocation7 + $0xc8] sm:$0xff]
    %v124 = vld [vmem:[#allocation7 + $0xd0] sm:$0xff]
    %v125 = vld [vmem:[#allocation7 + $0xd8] sm:$0xff]
    %v126 = vld [vmem:[#allocation7 + $0xe0] sm:$0xff]
    %v127 = vld [vmem:[#allocation7 + $0xe8] sm:$0xff]
    %v128 = vld [vmem:[#allocation7 + $0xf0] sm:$0xff]
    %v129 = vld [vmem:[#allocation7 + $0xf8] sm:$0xff]
    %v162 = vunpack.c.l.b16 %v98
    %v163 = vunpack.c.h.b16 %v98
    %v164 = vunpack.c.l.b16 %v99
    %v165 = vunpack.c.h.b16 %v99
    %v166 = vunpack.c.l.b16 %v100
    %v167 = vunpack.c.h.b16 %v100
    %v168 = vunpack.c.l.b16 %v101
    %v169 = vunpack.c.h.b16 %v101
    %v170 = vunpack.c.l.b16 %v102
    %v171 = vunpack.c.h.b16 %v102
    %v172 = vunpack.c.l.b16 %v103
    %v173 = vunpack.c.h.b16 %v103
    %v174 = vunpack.c.l.b16 %v104
    %v175 = vunpack.c.h.b16 %v104
    %v176 = vunpack.c.l.b16 %v105
    %v177 = vunpack.c.h.b16 %v105
    %v178 = vunpack.c.l.b16 %v106
    %v179 = vunpack.c.h.b16 %v106
    %v180 = vunpack.c.l.b16 %v107
    %v181 = vunpack.c.h.b16 %v107
    %v182 = vunpack.c.l.b16 %v108
    %v183 = vunpack.c.h.b16 %v108
    %v184 = vunpack.c.l.b16 %v109
    %v185 = vunpack.c.h.b16 %v109
    %v186 = vunpack.c.l.b16 %v110
    %v187 = vunpack.c.h.b16 %v110
    %v188 = vunpack.c.l.b16 %v111
    %v189 = vunpack.c.h.b16 %v111
    %v190 = vunpack.c.l.b16 %v112
    %v191 = vunpack.c.h.b16 %v112
    %v192 = vunpack.c.l.b16 %v113
    %v193 = vunpack.c.h.b16 %v113
    %v194 = vunpack.c.l.b16 %v114
    %v195 = vunpack.c.h.b16 %v114
    %v196 = vunpack.c.l.b16 %v115
    %v197 = vunpack.c.h.b16 %v115
    %v198 = vunpack.c.l.b16 %v116
    %v199 = vunpack.c.h.b16 %v116
    %v200 = vunpack.c.l.b16 %v117
    %v201 = vunpack.c.h.b16 %v117
    %v202 = vunpack.c.l.b16 %v118
    %v203 = vunpack.c.h.b16 %v118
    %v204 = vunpack.c.l.b16 %v119
    %v205 = vunpack.c.h.b16 %v119
    %v206 = vunpack.c.l.b16 %v120
    %v207 = vunpack.c.h.b16 %v120
    %v208 = vunpack.c.l.b16 %v121
    %v209 = vunpack.c.h.b16 %v121
    %v210 = vunpack.c.l.b16 %v122
    %v211 = vunpack.c.h.b16 %v122
    %v212 = vunpack.c.l.b16 %v123
    %v213 = vunpack.c.h.b16 %v123
    %v214 = vunpack.c.l.b16 %v124
    %v215 = vunpack.c.h.b16 %v124
    %v216 = vunpack.c.l.b16 %v125
    %v217 = vunpack.c.h.b16 %v125
    %v218 = vunpack.c.l.b16 %v126
    %v219 = vunpack.c.h.b16 %v126
    %v220 = vunpack.c.l.b16 %v127
    %v221 = vunpack.c.h.b16 %v127
    %v222 = vunpack.c.l.b16 %v128
    %v223 = vunpack.c.h.b16 %v128
    %v224 = vunpack.c.l.b16 %v129
    %v225 = vunpack.c.h.b16 %v129
    %v226 = vpack.c.b16 %v166, %v162
    %v227 = vpack.c.b16 %v167, %v163
    %v228 = vpack.c.b16 %v168, %v164
    %v229 = vpack.c.b16 %v169, %v165
    %v230 = vpack.c.b16 %v174, %v170
    %v231 = vpack.c.b16 %v175, %v171
    %v232 = vpack.c.b16 %v176, %v172
    %v233 = vpack.c.b16 %v177, %v173
    %v234 = vpack.c.b16 %v182, %v178
    %v235 = vpack.c.b16 %v183, %v179
    %v236 = vpack.c.b16 %v184, %v180
    %v237 = vpack.c.b16 %v185, %v181
    %v238 = vpack.c.b16 %v190, %v186
    %v239 = vpack.c.b16 %v191, %v187
    %v240 = vpack.c.b16 %v192, %v188
    %v241 = vpack.c.b16 %v193, %v189
    %v242 = vpack.c.b16 %v198, %v194
    %v243 = vpack.c.b16 %v199, %v195
    %v244 = vpack.c.b16 %v200, %v196
    %v245 = vpack.c.b16 %v201, %v197
    %v246 = vpack.c.b16 %v206, %v202
    %v247 = vpack.c.b16 %v207, %v203
    %v248 = vpack.c.b16 %v208, %v204
    %v249 = vpack.c.b16 %v209, %v205
    %v250 = vpack.c.b16 %v214, %v210
    %v251 = vpack.c.b16 %v215, %v211
    %v252 = vpack.c.b16 %v216, %v212
    %v253 = vpack.c.b16 %v217, %v213
    %v254 = vpack.c.b16 %v222, %v218
    %v255 = vpack.c.b16 %v223, %v219
    %v256 = vpack.c.b16 %v224, %v220
    %v257 = vpack.c.b16 %v225, %v221
    %290 = vmatpush.bf16.msra.mxu0 %v254
    %291 = vmatpush.bf16.msra.mxu0 %v250
    %292 = vmatpush.bf16.msra.mxu0 %v246
    %293 = vmatpush.bf16.msra.mxu0 %v242
    %294 = vmatpush.bf16.msra.mxu0 %v238
    %295 = vmatpush.bf16.msra.mxu0 %v234
    %296 = vmatpush.bf16.msra.mxu0 %v230
    %297 = vmatpush.bf16.msra.mxu0 %v226
    %298 = vmatmul.bf16.gmra.mxu0 %v91
    %v299 = vpop.f32.mrf.mxu0
    %v300 = vadd.f32 0.0, %v299
    %v301 = vpop.f32.mrf.mxu0
    %302 = vdwg.mxu0
    %303 = vmatpush.bf16.msra.mxu0 %v255
    %304 = vmatpush.bf16.msra.mxu0 %v251
    %305 = vmatpush.bf16.msra.mxu0 %v247
    %306 = vmatpush.bf16.msra.mxu0 %v243
    %307 = vmatpush.bf16.msra.mxu0 %v239
    %308 = vmatpush.bf16.msra.mxu0 %v235
    %309 = vmatpush.bf16.msra.mxu0 %v231
    %310 = vmatpush.bf16.msra.mxu0 %v227
    %311 = vmatmul.bf16.gmra.mxu0 %v91
    %v312 = vpop.f32.mrf.mxu0
    %v313 = vadd.f32 0.0, %v312
    %v314 = vpop.f32.mrf.mxu0
    %315 = vdwg.mxu0
    %316 = vmatpush.bf16.msra.mxu0 %v256
    %317 = vmatpush.bf16.msra.mxu0 %v252
    %318 = vmatpush.bf16.msra.mxu0 %v248
    %319 = vmatpush.bf16.msra.mxu0 %v244
    %320 = vmatpush.bf16.msra.mxu0 %v240
    %321 = vmatpush.bf16.msra.mxu0 %v236
    %322 = vmatpush.bf16.msra.mxu0 %v232
    %323 = vmatpush.bf16.msra.mxu0 %v228
    %324 = vmatmul.bf16.gmra.mxu0 %v91
    %v325 = vpop.f32.mrf.mxu0
    %v326 = vadd.f32 0.0, %v325
    %v327 = vpop.f32.mrf.mxu0
    %328 = vdwg.mxu0
    %329 = vmatpush.bf16.msra.mxu0 %v257
    %330 = vmatpush.bf16.msra.mxu0 %v253
    %331 = vmatpush.bf16.msra.mxu0 %v249
    %332 = vmatpush.bf16.msra.mxu0 %v245
    %333 = vmatpush.bf16.msra.mxu0 %v241
    %334 = vmatpush.bf16.msra.mxu0 %v237
    %335 = vmatpush.bf16.msra.mxu0 %v233
    %336 = vmatpush.bf16.msra.mxu0 %v229
    %337 = vmatmul.bf16.gmra.mxu0 %v91
    %v338 = vpop.f32.mrf.mxu0
    %v339 = vadd.f32 0.0, %v338
    %v340 = vpop.f32.mrf.mxu0
    %341 = vdwg.mxu0
    %v346 = vunpack.c.l.b16 %v94
    %v347 = vunpack.c.h.b16 %v94
    %v348 = vunpack.c.l.b16 %v95
    %v349 = vunpack.c.h.b16 %v95
    %v350 = vunpack.c.l.b16 %v96
    %v351 = vunpack.c.h.b16 %v96
    %v352 = vunpack.c.l.b16 %v97
    %v353 = vunpack.c.h.b16 %v97
    %v354 = vpack.c.b16 %v350, %v346
    %v355 = vpack.c.b16 %v351, %v347
    %v356 = vpack.c.b16 %v352, %v348
    %v357 = vpack.c.b16 %v353, %v349
    %vm362 = vcmask 130048
    %v364 = vsel %vm362, %v93, 0
    %366 = vmatpush.bf16.msra.mxu0 0
    %367 = vmatpush.bf16.msra.mxu0 0
    %368 = vmatpush.bf16.msra.mxu0 0
    %369 = vmatpush.bf16.msra.mxu0 0
    %370 = vmatpush.bf16.msra.mxu0 0
    %371 = vmatpush.bf16.msra.mxu0 0
    %372 = vmatpush.bf16.msra.mxu0 0
    %373 = vmatpush.bf16.msra.mxu0 %v354
    %374 = vmatmul.bf16.gmra.mxu0 %v364
    %v375 = vpop.f32.mrf.mxu0
    %v376 = vadd.f32 %v300, %v375
    %v377 = vpop.f32.mrf.mxu0
    %378 = vdwg.mxu0
    %379 = vmatpush.bf16.msra.mxu0 0
    %380 = vmatpush.bf16.msra.mxu0 0
    %381 = vmatpush.bf16.msra.mxu0 0
    %382 = vmatpush.bf16.msra.mxu0 0
    %383 = vmatpush.bf16.msra.mxu0 0
    %384 = vmatpush.bf16.msra.mxu0 0
    %385 = vmatpush.bf16.msra.mxu0 0
    %386 = vmatpush.bf16.msra.mxu0 %v355
    %387 = vmatmul.bf16.gmra.mxu0 %v364
    %v388 = vpop.f32.mrf.mxu0
    %v389 = vadd.f32 %v313, %v388
    %v390 = vpop.f32.mrf.mxu0
    %391 = vdwg.mxu0
    %392 = vmatpush.bf16.msra.mxu0 0
    %393 = vmatpush.bf16.msra.mxu0 0
    %394 = vmatpush.bf16.msra.mxu0 0
    %395 = vmatpush.bf16.msra.mxu0 0
    %396 = vmatpush.bf16.msra.mxu0 0
    %397 = vmatpush.bf16.msra.mxu0 0
    %398 = vmatpush.bf16.msra.mxu0 0
    %399 = vmatpush.bf16.msra.mxu0 %v356
    %400 = vmatmul.bf16.gmra.mxu0 %v364
    %v401 = vpop.f32.mrf.mxu0
    %v402 = vadd.f32 %v326, %v401
    %v403 = vpop.f32.mrf.mxu0
    %404 = vdwg.mxu0
    %405 = vmatpush.bf16.msra.mxu0 0
    %406 = vmatpush.bf16.msra.mxu0 0
    %407 = vmatpush.bf16.msra.mxu0 0
    %408 = vmatpush.bf16.msra.mxu0 0
    %409 = vmatpush.bf16.msra.mxu0 0
    %410 = vmatpush.bf16.msra.mxu0 0
    %411 = vmatpush.bf16.msra.mxu0 0
    %412 = vmatpush.bf16.msra.mxu0 %v357
    %413 = vmatmul.bf16.gmra.mxu0 %v364
    %v414 = vpop.f32.mrf.mxu0
    %v415 = vadd.f32 %v339, %v414
    %v416 = vpop.f32.mrf.mxu0
    %417 = vdwg.mxu0
    %v418 = vld [vmem:[#allocation9] sm:$0xf]
    %v420 = vperm.slane %v418, 0
    %v421 = vperm.slane %v418, 1
    %v422 = vperm.slane %v418, 2
    %v423 = vperm.slane %v418, 3
    %v428 = vadd.f32 %v376, %v420
    %v429 = vadd.f32 %v389, %v421
    %v430 = vadd.f32 %v402, %v422
    %v431 = vadd.f32 %v415, %v423
    %v432 = vmul.f32 %v428, 0.5
    %v433 = vtanh.pop %v432
    %v434 = vmul.f32 %v433, 0.5
    %v435 = vadd.f32 %v434, 0.5
    %v436 = vmul.f32 %v429, 0.5
    %v437 = vtanh.pop %v436
    %v438 = vmul.f32 %v437, 0.5
    %v439 = vadd.f32 %v438, 0.5
    %v440 = vtanh.pop %v430
    %v441 = vmul.f32 %v431, 0.5
    %v442 = vtanh.pop %v441
    %v443 = vmul.f32 %v442, 0.5
    %v444 = vadd.f32 %v443, 0.5
    %v445 = vmul.f32 %v435, %v92
    %v446 = vmul.f32 %v439, %v440
    %v447 = vadd.f32 %v445, %v446
    %v448 = vtanh.pop %v447
    %v449 = vmul.f32 %v444, %v448
    %v450 = vpack.c.bf16 %v449, %v449
    %451 = vst [vmem:[#allocation2] sm:$0xf] %v450
    %452 = vst [vmem:[#allocation3] sm:$0xff] %v447
    %453 = vst [vmem:[#allocation12] sm:$0xf] %v450
    // Predicated region
    $region42: #{_lstm_seq_pallas.1} parent=1 // pred_check
      %p454 = pneg %p82
    $region43: #{_lstm_seq_pallas.1} parent=1 // pred_check_branch
      %456 = sbr.rel (%p454) target = $region45
    $region44: #{_lstm_seq_pallas.1} parent=1 // pred_region
      %v457 = vld [vmem:[#allocation2] sm:$0xf]
      %v458 = vunpack.c.l.bf16 %v457
      %459 = vst [vmem:[#allocation13] sm:$0xff] %v458
      %v460 = vld [vmem:[#allocation3] sm:$0xff]
      %461 = vst [vmem:[#allocation13 + $0x8] sm:$0xff] %v460
    $region45: #{_lstm_seq_pallas.1} parent=1 // pred_fallthru
      _
    // Predicated region
    $region46: #{_lstm_seq_pallas.1} parent=1 // pred_check
      _
    $region47: #{_lstm_seq_pallas.1} parent=1 // pred_check_branch
      %463 = sbr.rel (0) target = $region49
    $region48: #{_lstm_seq_pallas.1} parent=1 // pred_region
      %465 = vsyncadd [#allocation6], 0
      %s467 = sshll.u32 [#allocation12], 4
      %s468 = int_to_ptr.vmem [resolvable:$true] %s467
      %s469 = sshll.u32 %s5, 4
      %s470 = int_to_ptr.hbm [resolvable:$true] %s469
      %472 = dma.vmem_to_hbm [thread:$0]  %s468, 64, %s470, [#allocation6]
    $region49: #{_lstm_seq_pallas.1} parent=1 // pred_fallthru
      _
    // Predicated region
    $region50: #{_lstm_seq_pallas.1} parent=1 // pred_check
      _
    $region51: #{_lstm_seq_pallas.1} parent=1 // pred_check_branch
      %474 = sbr.rel (0) target = $region53
    $region52: #{_lstm_seq_pallas.1} parent=1 // pred_region
      %476 = vsyncadd [#allocation14], 0
      %s478 = sshll.u32 [#allocation13], 4
      %s479 = int_to_ptr.vmem [resolvable:$true] %s478
      %s480 = sshll.u32 %s6, 4
      %s481 = int_to_ptr.hbm [resolvable:$true] %s480
      %483 = dma.vmem_to_hbm [thread:$0]  %s479, 256, %s481, [#allocation14]
    $region53: #{_lstm_seq_pallas.1} parent=1 // pred_fallthru
      _
    // Predicated region
    $region54: #{_lstm_seq_pallas.1} parent=1 // pred_check
      _
    $region55: #{_lstm_seq_pallas.1} parent=1 // pred_check_branch
      %485 = sbr.rel (0) target = $region57
    $region56: #{_lstm_seq_pallas.1} parent=1 // pred_region
      %487 = dma.done [#allocation6], 64
    $region57: #{_lstm_seq_pallas.1} parent=1 // pred_fallthru
      _
    // Predicated region
    $region58: #{_lstm_seq_pallas.1} parent=1 // pred_check
      _
    $region59: #{_lstm_seq_pallas.1} parent=1 // pred_check_branch
      %489 = sbr.rel (0) target = $region61
    $region60: #{_lstm_seq_pallas.1} parent=1 // pred_region
      %491 = dma.done [#allocation14], 256
    $region61: #{_lstm_seq_pallas.1} parent=1 // pred_fallthru
      _
    %492 = vsyncpa [#allocation5], 1
    %493 = vsyncpa [#allocation8], 1
    %494 = vsyncpa [#allocation11], 1
    %495 = vsyncpa [#allocation6], 1
    %496 = vsyncpa [#allocation14], 1

</llo_original>
